<compile_context>
chip_gen: v7x
topology: tpu7x:2x2x1
jax: 0.10.0
libtpu: 0.0.40
codegen_flags: <defaults>
</compile_context>

<pallas_src>
import functools

import jax
import jax.numpy as jnp
from jax import lax
from jax.experimental import pallas as pl
from jax.experimental.pallas import tpu as pltpu


def _round_up(n, m):
    return ((n + m - 1) // m) * m


def _vmem_capacity_bytes():
    try:
        return int(pltpu.get_tpu_info().vmem_capacity_bytes)
    except Exception:
        return 128 * 1024 * 1024


# --------------------------------------------------------------------------- #
# Kernels
# --------------------------------------------------------------------------- #

def _layernorm_epilogue(x, acc_ref, epi_ref, o_ref, inv_d, eps):
    # dropout: module evaluated in inference mode -> identity.
    # TODO(synk): training-mode dropout would use pltpu.prng_seed/prng_random_bits.
    b2 = epi_ref[0:1, :]
    gamma = epi_ref[1:2, :]
    beta = epi_ref[2:3, :]
    # f32 epilogue: bias2 + residual + LayerNorm (one-pass stats; padded lanes
    # are exact zeros so they contribute nothing, and we divide by the TRUE d_in).
    y = acc_ref[...] + b2 + x.astype(jnp.float32)
    s = jnp.sum(y, axis=-1, keepdims=True)
    ss = jnp.sum(y * y, axis=-1, keepdims=True)
    mean = s * inv_d
    var = ss * inv_d - mean * mean            # biased variance, like PyTorch LN
    norm = (y - mean) * lax.rsqrt(var + eps)
    o_ref[...] = (norm * gamma + beta).astype(o_ref.dtype)


def _ffn_resident_kernel(x_ref, w1_ref, b1_ref, w2_ref, epi_ref, o_ref, acc_ref,
                         *, inv_d, eps, n_k, tk):
    """Weights VMEM-resident: 1-D token grid, in-kernel loop over d_hid slices."""
    mxu = w1_ref.dtype
    x = x_ref[...]
    xm = x.astype(mxu)                         # single cast, hoisted out of the loop
    acc_ref[...] = jnp.zeros_like(acc_ref)

    def body(kk, carry):
        off = pl.multiple_of(kk * tk, 128)
        h = jnp.dot(xm, w1_ref[:, pl.ds(off, tk)],
                    preferred_element_type=jnp.float32)
        h = jnp.maximum(h + b1_ref[:, pl.ds(off, tk)].astype(jnp.float32), 0.0)
        acc_ref[...] += jnp.dot(h.astype(mxu), w2_ref[pl.ds(off, tk), :],
                                preferred_element_type=jnp.float32)
        return carry

    lax.fori_loop(0, n_k, body, 0, unroll=(n_k <= 8))
    _layernorm_epilogue(x, acc_ref, epi_ref, o_ref, inv_d, eps)


def _ffn_stream_kernel(x_ref, w1_ref, b1_ref, w2_ref, epi_ref, o_ref, acc_ref,
                       *, inv_d, eps):
    """Weights streamed over a d_hid reduction grid axis (large d_in*d_hid)."""
    k = pl.program_id(1)

    @pl.when(k == 0)
    def _():
        acc_ref[...] = jnp.zeros_like(acc_ref)

    mxu = w1_ref.dtype
    x = x_ref[...]
    h = jnp.dot(x.astype(mxu), w1_ref[...], preferred_element_type=jnp.float32)
    h = jnp.maximum(h + b1_ref[...].astype(jnp.float32), 0.0)
    acc_ref[...] += jnp.dot(h.astype(mxu), w2_ref[...],
                            preferred_element_type=jnp.float32)

    @pl.when(k == pl.num_programs(1) - 1)
    def _():
        _layernorm_epilogue(x, acc_ref, epi_ref, o_ref, inv_d, eps)


# --------------------------------------------------------------------------- #
# Wrapper
# --------------------------------------------------------------------------- #

def make_positionwise_ffn(w1, b1, w2, b2, gamma, beta, *, eps=1e-6,
                          mxu_dtype=jnp.bfloat16, tm=None, tk=None,
                          _force_stream=False):
    """Pads + casts parameters ONCE and returns `apply(x)` (hoists weight prep)."""
    d_in, d_hid = w1.shape
    assert w2.shape == (d_hid, d_in)
    d_in_p = _round_up(d_in, 128)
    d_hid_p = _round_up(d_hid, 128)
    wb = int(jnp.dtype(mxu_dtype).itemsize)

    cap = _vmem_capacity_bytes()
    # Per-generation VMEM budget with headroom for compiler scratch/semaphores:
    # ~100 MiB on 128-MiB chips (v5e/v6e), ~48 MiB on 64-MiB v7x.
    budget = min(int(cap * 0.8), cap - (16 << 20))
    big_vmem = cap > (96 << 20)

    # Resident path if padded bf16 weights use at most half the budget.
    resident_w_bytes = 2 * d_in_p * d_hid_p * wb + d_hid_p * 4 + 3 * d_in_p * 4
    resident = (not _force_stream) and (resident_w_bytes <= budget // 2)

    if tk is None:
        tk = 512 if resident else (1024 if big_vmem else 512)
    tk = max(128, min(_round_up(tk, 128), d_hid_p))
    d_hid_p = _round_up(d_hid_p, tk)          # k slices must tile d_hid_p exactly

    # ---- pad + cast parameters once (zeros are exact no-ops downstream) -----
    def _pad2(a, r, c):
        return a if a.shape == (r, c) else jnp.pad(
            a, ((0, r - a.shape[0]), (0, c - a.shape[1])))

    def _pad1(a, n):
        return a if a.shape[0] == n else jnp.pad(a, (0, n - a.shape[0]))

    w1p = _pad2(w1, d_in_p, d_hid_p).astype(mxu_dtype)
    w2p = _pad2(w2, d_hid_p, d_in_p).astype(mxu_dtype)
    b1p = _pad1(b1, d_hid_p).reshape(1, d_hid_p).astype(jnp.float32)
    epi = jnp.stack([_pad1(b2, d_in_p), _pad1(gamma, d_in_p),
                     _pad1(beta, d_in_p)]).astype(jnp.float32)   # (3, d_in_p)

    def apply(x):
        return _positionwise_ffn_call(
            x, w1p, b1p, w2p, epi, d_in=d_in, d_in_p=d_in_p, d_hid_p=d_hid_p,
            tk=tk, tm=tm, resident=resident, budget=budget, eps=eps)

    return apply


def positionwise_ffn(x, w1, b1, w2, b2, gamma, beta, **kwargs):
    """One-shot convenience wrapper (prefer make_positionwise_ffn to hoist prep)."""
    return make_positionwise_ffn(w1, b1, w2, b2, gamma, beta, **kwargs)(x)


def _positionwise_ffn_call(x, w1p, b1p, w2p, epi, *, d_in, d_in_p, d_hid_p,
                           tk, tm, resident, budget, eps):
    B, S, _ = x.shape
    N = B * S
    xb = int(jnp.dtype(x.dtype).itemsize)
    wb = int(jnp.dtype(w1p.dtype).itemsize)

    # ---- footprint-derived token tile ---------------------------------------
    if resident:
        fixed = (w1p.size + w2p.size) * wb + b1p.size * 4 + epi.size * 4
    else:
        fixed = 2 * ((d_in_p * tk + tk * d_in_p) * wb + tk * 4) + epi.size * 4

    def per_tile(t):
        # x + out double-buffered, f32 accumulator, mxu-cast x copy, h temp (+copy)
        return (4 * t * d_in_p * xb + t * d_in_p * 4 + t * d_in_p * wb
                + t * tk * (4 + wb))

    if tm is None:
        tm_ = 512 if resident else (1024 if budget > (64 << 20) else 512)
    else:
        tm_ = tm
    tm_ = max(8, min(_round_up(tm_, 8), _round_up(N, 8)))
    while tm_ > 8 and fixed + per_tile(tm_) > budget:
        tm_ = max(8, _round_up(tm_ // 2, 8))

    n_pad = _round_up(N, tm_)
    n_tiles = n_pad // tm_
    n_k = d_hid_p // tk

    x2 = x.reshape(N, d_in)
    if (n_pad, d_in_p) != (N, d_in):
        x2 = jnp.pad(x2, ((0, n_pad - N), (0, d_in_p - d_in)))

    inv_d = 1.0 / d_in
    footprint = fixed + per_tile(tm_)
    vmem_limit = int(max(32 << 20, min(budget, footprint + (16 << 20))))

    # ---- advisory cost (weights streamed once if resident, else per token tile)
    w_stream = 1 if resident else n_tiles
    cost = pl.CostEstimate(
        flops=4 * n_pad * d_in_p * d_hid_p + 10 * n_pad * d_in_p,
        transcendentals=n_pad,
        bytes_accessed=(x2.size * xb + n_pad * d_in_p * xb
                        + (w1p.size + w2p.size) * wb * w_stream
                        + (b1p.size + epi.size) * 4 * w_stream),
    )

    if resident:
        kernel = functools.partial(_ffn_resident_kernel, inv_d=inv_d, eps=eps,
                                   n_k=n_k, tk=tk)
        grid = (n_tiles,)
        in_specs = [
            pl.BlockSpec((tm_, d_in_p), lambda i: (i, 0)),                # x tile
            pl.BlockSpec((d_in_p, d_hid_p), lambda i: (0, 0),
                         pipeline_mode=pl.Buffered(1)),                   # w1 (resident)
            pl.BlockSpec((1, d_hid_p), lambda i: (0, 0),
                         pipeline_mode=pl.Buffered(1)),                   # b1
            pl.BlockSpec((d_hid_p, d_in_p), lambda i: (0, 0),
                         pipeline_mode=pl.Buffered(1)),                   # w2 (resident)
            pl.BlockSpec((3, d_in_p), lambda i: (0, 0),
                         pipeline_mode=pl.Buffered(1)),                   # b2/gamma/beta
        ]
        out_specs = pl.BlockSpec((tm_, d_in_p), lambda i: (i, 0))
        dims = ("parallel",)
    else:
        kernel = functools.partial(_ffn_stream_kernel, inv_d=inv_d, eps=eps)
        grid = (n_tiles, n_k)
        in_specs = [
            pl.BlockSpec((tm_, d_in_p), lambda i, k: (i, 0)),             # x tile
            pl.BlockSpec((d_in_p, tk), lambda i, k: (0, k)),              # w1 k-slice
            pl.BlockSpec((1, tk), lambda i, k: (0, k)),                   # b1 k-slice
            pl.BlockSpec((tk, d_in_p), lambda i, k: (k, 0)),              # w2 k-slice
            pl.BlockSpec((3, d_in_p), lambda i, k: (0, 0),
                         pipeline_mode=pl.Buffered(1)),                   # b2/gamma/beta
        ]
        out_specs = pl.BlockSpec((tm_, d_in_p), lambda i, k: (i, 0))
        dims = ("parallel", "arbitrary")

    out = pl.pallas_call(
        kernel,
        out_shape=jax.ShapeDtypeStruct((n_pad, d_in_p), x.dtype),
        grid_spec=pltpu.PrefetchScalarGridSpec(
            num_scalar_prefetch=0,
            grid=grid,
            in_specs=in_specs,
            out_specs=out_specs,
            scratch_shapes=[pltpu.VMEM((tm_, d_in_p), jnp.float32)],      # fc2 acc
        ),
        compiler_params=pltpu.CompilerParams(
            dimension_semantics=dims,
            vmem_limit_bytes=vmem_limit,
        ),
        cost_estimate=cost,
    )(x2, w1p, b1p, w2p, epi)

    return out[:N, :d_in].reshape(B, S, d_in)


# --------------------------------------------------------------------------- #
# Reference + tests
# --------------------------------------------------------------------------- #

def reference_ffn(x, w1, b1, w2, b2, gamma, beta, eps=1e-6):
    h = jnp.maximum(x @ w1 + b1, 0.0)
    y = h @ w2 + b2
    y = y + x
    mean = jnp.mean(y, axis=-1, keepdims=True)
    var = jnp.mean((y - mean) ** 2, axis=-1, keepdims=True)
    return (y - mean) / jnp.sqrt(var + eps) * gamma + beta


def _make_params(key, d_in, d_hid):
    k1, k2, k3, k4 = jax.random.split(key, 4)
    w1 = jax.random.normal(k1, (d_in, d_hid), dtype=jnp.float32) / jnp.sqrt(d_in)
    b1 = jax.random.normal(k2, (d_hid,), dtype=jnp.float32) * 0.01
    w2 = jax.random.normal(k3, (d_hid, d_in), dtype=jnp.float32) / jnp.sqrt(d_hid)
    b2 = jax.random.normal(k4, (d_in,), dtype=jnp.float32) * 0.01
    gamma = jnp.ones((d_in,), dtype=jnp.float32)
    beta = jnp.zeros((d_in,), dtype=jnp.float32)
    return w1, b1, w2, b2, gamma, beta


if __name__ == "__main__":
    key = jax.random.PRNGKey(0)
    kx1, kp1, kx2, kp2, kx3, kp3 = jax.random.split(key, 6)

    # Test 1: module-consistent shapes, f32 MXU path, hoisted-prep closure,
    # tight tolerance (validates the algorithm exactly).
    B, S, d_in, d_hid = 2, 8, 32, 64
    x = jax.random.normal(kx1, (B, S, d_in), dtype=jnp.float32)
    params = _make_params(kp1, d_in, d_hid)
    ffn = make_positionwise_ffn(*params, mxu_dtype=jnp.float32)
    out = jax.block_until_ready(ffn(x))
    ref = reference_ffn(x, *params)
    assert out.shape == (B, S, d_in)
    assert jnp.allclose(out, ref, atol=1e-4, rtol=1e-4), "mismatch vs reference (1)"

    # Test 2: default bf16 MXU path, padding + multi-slice in-kernel k loop
    # (d_hid=200 -> padded 256, tk=128 -> 2 resident k slices, token tail pad).
    B, S, d_in, d_hid = 3, 7, 48, 200
    x = jax.random.normal(kx2, (B, S, d_in), dtype=jnp.float32)
    params = _make_params(kp2, d_in, d_hid)
    out = jax.block_until_ready(positionwise_ffn(x, *params, tm=8, tk=128))
    ref = reference_ffn(x, *params)
    assert out.shape == (B, S, d_in)
    assert jnp.allclose(out, ref, atol=1e-1, rtol=1e-2), "mismatch vs reference (2)"

    # Test 3: force the streaming fallback path (2-D grid, accumulator over k).
    B, S, d_in, d_hid = 2, 9, 40, 200
    x = jax.random.normal(kx3, (B, S, d_in), dtype=jnp.float32)
    params = _make_params(kp3, d_in, d_hid)
    out = jax.block_until_ready(
        positionwise_ffn(x, *params, tm=8, tk=128, _force_stream=True))
    ref = reference_ffn(x, *params)
    assert out.shape == (B, S, d_in)
    assert jnp.allclose(out, ref, atol=1e-1, rtol=1e-2), "mismatch vs reference (3)"

    print("KERNEL_OK")
</pallas_src>

<mosaic_0001>
module attributes {stable_mosaic.version = 11 : i64} {
  func.func @_ffn_resident_kernel(%arg0: i32, %arg1: memref<16x128xf32, #tpu.memory_space<vmem>>, %arg2: memref<128x128xf32, #tpu.memory_space<vmem>>, %arg3: memref<1x128xf32, #tpu.memory_space<vmem>>, %arg4: memref<128x128xf32, #tpu.memory_space<vmem>>, %arg5: memref<3x128xf32, #tpu.memory_space<vmem>>, %arg6: memref<16x128xf32, #tpu.memory_space<vmem>>, %arg7: memref<16x128xf32, #tpu.memory_space<vmem>>) attributes {dimension_semantics = [#tpu.dimension_semantics<parallel>], iteration_bounds = array<i64: 1>, scalar_prefetch = 0 : i64, scratch_operands = 1 : i64, tpu.core_type = #tpu.core_type<tc>, window_params = [{transform_indices = @transform_0, window_bounds = array<i64: 16, 128>}, {pipeline_mode = #tpu.pipeline_mode<synchronous>, transform_indices = @transform_1, window_bounds = array<i64: 128, 128>}, {pipeline_mode = #tpu.pipeline_mode<synchronous>, transform_indices = @transform_2, window_bounds = array<i64: 1, 128>}, {pipeline_mode = #tpu.pipeline_mode<synchronous>, transform_indices = @transform_3, window_bounds = array<i64: 128, 128>}, {pipeline_mode = #tpu.pipeline_mode<synchronous>, transform_indices = @transform_4, window_bounds = array<i64: 3, 128>}, {transform_indices = @transform_5, window_bounds = array<i64: 16, 128>}]} {
    %c0 = arith.constant 0 : index
    %c0_0 = arith.constant 0 : index
    %0 = vector.load %arg1[%c0, %c0_0] : memref<16x128xf32, #tpu.memory_space<vmem>>, vector<16x128xf32>
    %cst = arith.constant 0.000000e+00 : f32
    %1 = vector.broadcast %cst : f32 to vector<16x128xf32>
    %c0_1 = arith.constant 0 : index
    %c0_2 = arith.constant 0 : index
    %2 = vector.load %arg7[%c0_1, %c0_2] : memref<16x128xf32, #tpu.memory_space<vmem>>, vector<16x128xf32>
    tpu.vector_store %arg7[%c0_1, %c0_2], %1 {strides = array<i32>} : memref<16x128xf32, #tpu.memory_space<vmem>>, vector<16x128xf32>,
    %c0_i32 = arith.constant 0 : i32
    %c128_i32 = arith.constant 128 : i32
    %3 = arith.muli %c0_i32, %c128_i32 : i32
    %4 = tpu.assume_multiple %3, 128 : i32
    %c0_3 = arith.constant 0 : index
    %5 = arith.index_cast %4 : i32 to index
    %6 = vector.load %arg2[%c0_3, %5] : memref<128x128xf32, #tpu.memory_space<vmem>>, vector<128x128xf32>
    %cst_4 = arith.constant dense<0.000000e+00> : vector<16x128xf32>
    %7 = tpu.matmul %0, %6, %cst_4 {dimension_numbers = #tpu.dot_dimension_numbers<[1], [0], [0], [1], [0, 0, 1, 1], [], []>} : vector<16x128xf32>, vector<128x128xf32>, vector<16x128xf32> -> vector<16x128xf32>
    %c0_5 = arith.constant 0 : index
    %8 = arith.index_cast %4 : i32 to index
    %9 = vector.load %arg3[%c0_5, %8] : memref<1x128xf32, #tpu.memory_space<vmem>>, vector<1x128xf32>
    %10 = vector.broadcast %9 : vector<1x128xf32> to vector<16x128xf32>
    %11 = arith.addf %7, %10 : vector<16x128xf32>
    %cst_6 = arith.constant 0.000000e+00 : f32
    %12 = vector.broadcast %cst_6 : f32 to vector<16x128xf32>
    %13 = arith.maximumf %11, %12 : vector<16x128xf32>
    %c0_7 = arith.constant 0 : index
    %c0_8 = arith.constant 0 : index
    %14 = vector.load %arg7[%c0_7, %c0_8] : memref<16x128xf32, #tpu.memory_space<vmem>>, vector<16x128xf32>
    %15 = arith.index_cast %4 : i32 to index
    %c0_9 = arith.constant 0 : index
    %16 = vector.load %arg4[%15, %c0_9] : memref<128x128xf32, #tpu.memory_space<vmem>>, vector<128x128xf32>
    %cst_10 = arith.constant dense<0.000000e+00> : vector<16x128xf32>
    %17 = tpu.matmul %13, %16, %cst_10 {dimension_numbers = #tpu.dot_dimension_numbers<[1], [0], [0], [1], [0, 0, 1, 1], [], []>} : vector<16x128xf32>, vector<128x128xf32>, vector<16x128xf32> -> vector<16x128xf32>
    %18 = arith.addf %14, %17 : vector<16x128xf32>
    %c0_11 = arith.constant 0 : index
    %c0_12 = arith.constant 0 : index
    %19 = vector.load %arg7[%c0_11, %c0_12] : memref<16x128xf32, #tpu.memory_space<vmem>>, vector<16x128xf32>
    tpu.vector_store %arg7[%c0_11, %c0_12], %18 {strides = array<i32>} : memref<16x128xf32, #tpu.memory_space<vmem>>, vector<16x128xf32>,
    %c1_i32 = arith.constant 1 : i32
    %c0_13 = arith.constant 0 : index
    %c0_14 = arith.constant 0 : index
    %20 = vector.load %arg5[%c0_13, %c0_14] : memref<3x128xf32, #tpu.memory_space<vmem>>, vector<1x128xf32>
    %c1 = arith.constant 1 : index
    %c0_15 = arith.constant 0 : index
    %21 = vector.load %arg5[%c1, %c0_15] : memref<3x128xf32, #tpu.memory_space<vmem>>, vector<1x128xf32>
    %c2 = arith.constant 2 : index
    %c0_16 = arith.constant 0 : index
    %22 = vector.load %arg5[%c2, %c0_16] : memref<3x128xf32, #tpu.memory_space<vmem>>, vector<1x128xf32>
    %c0_17 = arith.constant 0 : index
    %c0_18 = arith.constant 0 : index
    %23 = vector.load %arg7[%c0_17, %c0_18] : memref<16x128xf32, #tpu.memory_space<vmem>>, vector<16x128xf32>
    %24 = vector.broadcast %20 : vector<1x128xf32> to vector<16x128xf32>
    %25 = arith.addf %23, %24 : vector<16x128xf32>
    %26 = arith.addf %25, %0 : vector<16x128xf32>
    %cst_19 = arith.constant dense<0.000000e+00> : vector<16xf32>
    %27 = vector.multi_reduction <add>, %26, %cst_19 [1] : vector<16x128xf32> to vector<16xf32>
    %28 = vector.shape_cast %27 : vector<16xf32> to vector<16x1xf32>
    %29 = arith.mulf %26, %26 : vector<16x128xf32>
    %cst_20 = arith.constant dense<0.000000e+00> : vector<16xf32>
    %30 = vector.multi_reduction <add>, %29, %cst_20 [1] : vector<16x128xf32> to vector<16xf32>
    %31 = vector.shape_cast %30 : vector<16xf32> to vector<16x1xf32>
    %cst_21 = arith.constant 3.125000e-02 : f32
    %32 = vector.broadcast %cst_21 : f32 to vector<16x1xf32>
    %33 = arith.mulf %28, %32 : vector<16x1xf32>
    %cst_22 = arith.constant 3.125000e-02 : f32
    %34 = vector.broadcast %cst_22 : f32 to vector<16x1xf32>
    %35 = arith.mulf %31, %34 : vector<16x1xf32>
    %36 = arith.mulf %33, %33 : vector<16x1xf32>
    %37 = arith.subf %35, %36 : vector<16x1xf32>
    %38 = vector.broadcast %33 : vector<16x1xf32> to vector<16x128xf32>
    %39 = arith.subf %26, %38 : vector<16x128xf32>
    %cst_23 = arith.constant 9.99999997E-7 : f32
    %40 = vector.broadcast %cst_23 : f32 to vector<16x1xf32>
    %41 = arith.addf %37, %40 : vector<16x1xf32>
    %42 = math.rsqrt %41 : vector<16x1xf32>
    %43 = vector.broadcast %42 : vector<16x1xf32> to vector<16x128xf32>
    %44 = arith.mulf %39, %43 : vector<16x128xf32>
    %45 = vector.broadcast %21 : vector<1x128xf32> to vector<16x128xf32>
    %46 = arith.mulf %44, %45 : vector<16x128xf32>
    %47 = vector.broadcast %22 : vector<1x128xf32> to vector<16x128xf32>
    %48 = arith.addf %46, %47 : vector<16x128xf32>
    %c0_24 = arith.constant 0 : index
    %c0_25 = arith.constant 0 : index
    %49 = vector.load %arg6[%c0_24, %c0_25] : memref<16x128xf32, #tpu.memory_space<vmem>>, vector<16x128xf32>
    tpu.vector_store %arg6[%c0_24, %c0_25], %48 {strides = array<i32>} : memref<16x128xf32, #tpu.memory_space<vmem>>, vector<16x128xf32>,
    return
  }
  func.func @transform_0(%arg0: i32) -> (i32, i32) {
    %c0_i32 = arith.constant 0 : i32
    %c0_i32_0 = arith.constant 0 : i32
    return %arg0, %c0_i32 : i32, i32
  }
  func.func @transform_1(%arg0: i32) -> (i32, i32) {
    %c0_i32 = arith.constant 0 : i32
    %c0_i32_0 = arith.constant 0 : i32
    %c0_i32_1 = arith.constant 0 : i32
    return %c0_i32, %c0_i32_0 : i32, i32
  }
  func.func @transform_2(%arg0: i32) -> (i32, i32) {
    %c0_i32 = arith.constant 0 : i32
    %c0_i32_0 = arith.constant 0 : i32
    %c0_i32_1 = arith.constant 0 : i32
    return %c0_i32, %c0_i32_0 : i32, i32
  }
  func.func @transform_3(%arg0: i32) -> (i32, i32) {
    %c0_i32 = arith.constant 0 : i32
    %c0_i32_0 = arith.constant 0 : i32
    %c0_i32_1 = arith.constant 0 : i32
    return %c0_i32, %c0_i32_0 : i32, i32
  }
  func.func @transform_4(%arg0: i32) -> (i32, i32) {
    %c0_i32 = arith.constant 0 : i32
    %c0_i32_0 = arith.constant 0 : i32
    %c0_i32_1 = arith.constant 0 : i32
    return %c0_i32, %c0_i32_0 : i32, i32
  }
  func.func @transform_5(%arg0: i32) -> (i32, i32) {
    %c0_i32 = arith.constant 0 : i32
    %c0_i32_0 = arith.constant 0 : i32
    return %arg0, %c0_i32 : i32, i32
  }
}

</mosaic_0001>

<llo_original>
// kernel: tpu_custom_call.1
$region0: #{tpu_custom_call.1}
  #allocation0 [shape = 'u32[]', space=smem, size = 0x4, offset = 0x4, fixed_abs, tag = 'smem constant byte address 0x4 - core index']
  #allocation1 [shape = 'u32[144,128]{1,0:T(1,128)}', space=vmem, size = 0x12000, scoped, tag = 'internal scratch']
  #allocation2 [shape = 'f32[16,128]{1,0:T(8,128)}', space=vmem, size = 0x2000, scoped, tag = 'scratch operand']
  %s0 = inlined_call_operand.hbm [shape: f32[16,128], index: 0, kind: input, shape index: {}]
  %s1 = inlined_call_operand.hbm [shape: f32[128,128], index: 1, kind: input, shape index: {}]
  %s2 = inlined_call_operand.vmem [shape: f32[1,128], index: 2, kind: input, shape index: {}]
  %s3 = inlined_call_operand.hbm [shape: f32[128,128], index: 3, kind: input, shape index: {}]
  %s4 = inlined_call_operand.vmem [shape: f32[3,128], index: 4, kind: input, shape index: {}]
  %s5 = inlined_call_operand.hbm [shape: f32[16,128], index: 5, kind: output, shape index: {}]
  %s6 = sld [smem:[#allocation0]]
  $region42: #{tpu_custom_call.1} parent=0
    _
  %s8 = ssub.s32 1, %s6
  %s9 = scalar_select 0, %s8, %s6
  $region1: #{tpu_custom_call.1} parent=0
    #allocation3 [shape = 'u8[8192]{0}', space=vmem, size = 0x2000, scoped, tag = 'input window, operand 0, single buffered']
    #allocation4 [shape = 's32[1]{0}', space=sflag, size = 0x4, scoped, tag = 'scoped memory for tpu_custom_call.1']
    #allocation5 [shape = 's32[1]{0}', space=sflag, size = 0x4, scoped, tag = 'scoped memory for tpu_custom_call.1']
    #allocation6 [shape = 'u8[65536]{0}', space=vmem, size = 0x10000, scoped, tag = 'input window, operand 1, single buffered']
    #allocation7 [shape = 's32[1]{0}', space=sflag, size = 0x4, scoped, tag = 'scoped memory for tpu_custom_call.1']
    #allocation8 [shape = 'u8[65536]{0}', space=vmem, size = 0x10000, scoped, tag = 'input window, operand 3, single buffered']
    #allocation9 [shape = 'u8[8192]{0}', space=vmem, size = 0x2000, scoped, tag = 'output window, operand 0, single buffered']
    %10 = vsyncpa [#allocation4], 0
    %11 = vsyncpa [#allocation7], 0
    %12 = vsyncpa [#allocation5], 0
    // Predicated region
    $region2: #{tpu_custom_call.1} parent=1 // pred_check
      _
    $region3: #{tpu_custom_call.1} parent=1 // pred_check_branch
      %14 = sbr.rel (0) target = $region5
    $region4: #{tpu_custom_call.1} parent=1 // pred_region
      %s16 = ssub.s32 256, 256
      %17 = vsyncadd [#allocation4], %s16
      %s18 = sshll.u32 [#allocation3], 4
      %s19 = int_to_ptr.vmem [resolvable:$true] %s18
      %24 = dma.hbm_to_vmem [thread:$0]  %s0, 256, %s19, [#allocation4], 128, 128, 8
    $region5: #{tpu_custom_call.1} parent=1 // pred_fallthru
      _
    // Predicated region
    $region6: #{tpu_custom_call.1} parent=1 // pred_check
      _
    $region7: #{tpu_custom_call.1} parent=1 // pred_check_branch
      %26 = sbr.rel (0) target = $region9
    $region8: #{tpu_custom_call.1} parent=1 // pred_region
      %s28 = ssub.s32 2048, 2048
      %29 = vsyncadd [#allocation7], %s28
      %s30 = sshll.u32 [#allocation6], 4
      %s31 = int_to_ptr.vmem [resolvable:$true] %s30
      %36 = dma.hbm_to_vmem [thread:$0]  %s1, 2048, %s31, [#allocation7], 128, 128, 8
    $region9: #{tpu_custom_call.1} parent=1 // pred_fallthru
      _
    // Predicated region
    $region10: #{tpu_custom_call.1} parent=1 // pred_check
      _
    $region11: #{tpu_custom_call.1} parent=1 // pred_check_branch
      %38 = sbr.rel (0) target = $region13
    $region12: #{tpu_custom_call.1} parent=1 // pred_region
      _
    $region13: #{tpu_custom_call.1} parent=1 // pred_fallthru
      _
    // Predicated region
    $region14: #{tpu_custom_call.1} parent=1 // pred_check
      _
    $region15: #{tpu_custom_call.1} parent=1 // pred_check_branch
      %40 = sbr.rel (0) target = $region17
    $region16: #{tpu_custom_call.1} parent=1 // pred_region
      %s42 = ssub.s32 2048, 2048
      %43 = vsyncadd [#allocation7], %s42
      %s44 = sshll.u32 [#allocation8], 4
      %s45 = int_to_ptr.vmem [resolvable:$true] %s44
      %50 = dma.hbm_to_vmem [thread:$0]  %s3, 2048, %s45, [#allocation7], 128, 128, 8
    $region17: #{tpu_custom_call.1} parent=1 // pred_fallthru
      _
    // Predicated region
    $region18: #{tpu_custom_call.1} parent=1 // pred_check
      _
    $region19: #{tpu_custom_call.1} parent=1 // pred_check_branch
      %52 = sbr.rel (0) target = $region21
    $region20: #{tpu_custom_call.1} parent=1 // pred_region
      _
    $region21: #{tpu_custom_call.1} parent=1 // pred_fallthru
      _
    // Predicated region
    $region22: #{tpu_custom_call.1} parent=1 // pred_check
      _
    $region23: #{tpu_custom_call.1} parent=1 // pred_check_branch
      %54 = sbr.rel (0) target = $region25
    $region24: #{tpu_custom_call.1} parent=1 // pred_region
      %55 = dma.done [#allocation4], 256
    $region25: #{tpu_custom_call.1} parent=1 // pred_fallthru
      _
    // Predicated region
    $region26: #{tpu_custom_call.1} parent=1 // pred_check
      _
    $region27: #{tpu_custom_call.1} parent=1 // pred_check_branch
      %57 = sbr.rel (0) target = $region29
    $region28: #{tpu_custom_call.1} parent=1 // pred_region
      %58 = dma.done [#allocation7], 2048
    $region29: #{tpu_custom_call.1} parent=1 // pred_fallthru
      _
    // Predicated region
    $region30: #{tpu_custom_call.1} parent=1 // pred_check
      _
    $region31: #{tpu_custom_call.1} parent=1 // pred_check_branch
      %60 = sbr.rel (0) target = $region33
    $region32: #{tpu_custom_call.1} parent=1 // pred_region
      %61 = dma.done [#allocation7], 2048
    $region33: #{tpu_custom_call.1} parent=1 // pred_fallthru
      _
    %v62 = vld [vmem:[#allocation3] sm:$0xff]
    %v63 = vld [vmem:[#allocation3 + $0x8] sm:$0xff]
    %64 = vst [vmem:[#allocation2] sm:$0xff] 0.0
    %65 = vst [vmem:[#allocation2 + $0x8] sm:$0xff] 0.0
    %v66 = vld [vmem:[#allocation6] sm:$0xff]
    %v67 = vld [vmem:[#allocation6 + $0x8] sm:$0xff]
    %v68 = vld [vmem:[#allocation6 + $0x10] sm:$0xff]
    %v69 = vld [vmem:[#allocation6 + $0x18] sm:$0xff]
    %v70 = vld [vmem:[#allocation6 + $0x20] sm:$0xff]
    %v71 = vld [vmem:[#allocation6 + $0x28] sm:$0xff]
    %v72 = vld [vmem:[#allocation6 + $0x30] sm:$0xff]
    %v73 = vld [vmem:[#allocation6 + $0x38] sm:$0xff]
    %v74 = vld [vmem:[#allocation6 + $0x40] sm:$0xff]
    %v75 = vld [vmem:[#allocation6 + $0x48] sm:$0xff]
    %v76 = vld [vmem:[#allocation6 + $0x50] sm:$0xff]
    %v77 = vld [vmem:[#allocation6 + $0x58] sm:$0xff]
    %v78 = vld [vmem:[#allocation6 + $0x60] sm:$0xff]
    %v79 = vld [vmem:[#allocation6 + $0x68] sm:$0xff]
    %v80 = vld [vmem:[#allocation6 + $0x70] sm:$0xff]
    %v81 = vld [vmem:[#allocation6 + $0x78] sm:$0xff]
    %v82 = vld [vmem:[%s2] sm:$0x1]
    %v84 = vlaneseq
    %v85 = vshrl.u32 %v84, 7
    %v86 = vsub.s32 0, %v85
    %v87 = vrot.slane %v82, %v86
    %89 = vmatprep.subr.mxu0 0.0
    %90 = vmatpush1.msra.mxu0 %v66
    %91 = vmatprep.subr.mxu0 0.0
    %92 = vmatpush1.msra.mxu0 %v67
    %93 = vmatprep.subr.mxu0 0.0
    %94 = vmatpush1.msra.mxu0 %v68
    %95 = vmatprep.subr.mxu0 0.0
    %96 = vmatpush1.msra.mxu0 %v69
    %97 = vmatprep.subr.mxu0 0.0
    %98 = vmatpush1.msra.mxu0 %v70
    %99 = vmatprep.subr.mxu0 0.0
    %100 = vmatpush1.msra.mxu0 %v71
    %101 = vmatprep.subr.mxu0 0.0
    %102 = vmatpush1.msra.mxu0 %v72
    %103 = vmatprep.subr.mxu0 0.0
    %104 = vmatpush1.msra.mxu0 %v73
    %105 = vmatprep.subr.mxu0 0.0
    %106 = vmatpush1.msra.mxu0 %v74
    %107 = vmatprep.subr.mxu0 0.0
    %108 = vmatpush1.msra.mxu0 %v75
    %109 = vmatprep.subr.mxu0 0.0
    %110 = vmatpush1.msra.mxu0 %v76
    %111 = vmatprep.subr.mxu0 0.0
    %112 = vmatpush1.msra.mxu0 %v77
    %113 = vmatprep.subr.mxu0 0.0
    %114 = vmatpush1.msra.mxu0 %v78
    %115 = vmatprep.subr.mxu0 0.0
    %116 = vmatpush1.msra.mxu0 %v79
    %117 = vmatprep.subr.mxu0 0.0
    %118 = vmatpush1.msra.mxu0 %v80
    %119 = vmatprep.subr.mxu0 0.0
    %120 = vmatpush1.msra.mxu0 %v81
    %121 = vmatprep.subr.mxu0 0.0
    %122 = vmatpush1.msra.mxu0 0.0
    %123 = vmatprep.subr.mxu0 0.0
    %124 = vmatpush1.msra.mxu0 0.0
    %125 = vmatprep.subr.mxu0 0.0
    %126 = vmatpush1.msra.mxu0 0.0
    %127 = vmatprep.subr.mxu0 0.0
    %128 = vmatpush1.msra.mxu0 0.0
    %129 = vmatprep.subr.mxu0 0.0
    %130 = vmatpush1.msra.mxu0 0.0
    %131 = vmatprep.subr.mxu0 0.0
    %132 = vmatpush1.msra.mxu0 0.0
    %133 = vmatprep.subr.mxu0 0.0
    %134 = vmatpush1.msra.mxu0 0.0
    %135 = vmatprep.subr.mxu0 0.0
    %136 = vmatpush1.msra.mxu0 0.0
    %137 = vmatprep.subr.mxu0 0.0
    %138 = vmatpush1.msra.mxu0 0.0
    %139 = vmatprep.subr.mxu0 0.0
    %140 = vmatpush1.msra.mxu0 0.0
    %141 = vmatprep.subr.mxu0 0.0
    %142 = vmatpush1.msra.mxu0 0.0
    %143 = vmatprep.subr.mxu0 0.0
    %144 = vmatpush1.msra.mxu0 0.0
    %145 = vmatprep.subr.mxu0 0.0
    %146 = vmatpush1.msra.mxu0 0.0
    %147 = vmatprep.subr.mxu0 0.0
    %148 = vmatpush1.msra.mxu0 0.0
    %149 = vmatprep.subr.mxu0 0.0
    %150 = vmatpush1.msra.mxu0 0.0
    %151 = vmatprep.subr.mxu0 0.0
    %152 = vmatpush1.msra.mxu0 0.0
    %153 = vmatprep.mubr.f32.mxu0 0.0
    %154 = vmatmul.mubr.f32.gmra.mrb[0].mxu0 %v62
    %v155 = vpop.f32.mrb[0].mxu0
    %v156 = vadd.f32 %v87, %v155
    %v157 = vpop.f32.mrb[0].mxu0
    %158 = vmatprep.mubr.f32.mxu0 0.0
    %159 = vmatmul.mubr.f32.gmra.mrb[0].mxu0 %v63
    %v160 = vpop.f32.mrb[0].mxu0
    %v161 = vadd.f32 %v87, %v160
    %v162 = vpop.f32.mrb[0].mxu0
    %163 = vdwg.mxu0
    %v164 = vmax.f32 %v156, 0.0
    %v165 = vmax.f32 %v161, 0.0
    %v166 = vld [vmem:[#allocation2] sm:$0xff]
    %v167 = vld [vmem:[#allocation2 + $0x8] sm:$0xff]
    %v168 = vld [vmem:[#allocation8] sm:$0xff]
    %v169 = vld [vmem:[#allocation8 + $0x8] sm:$0xff]
    %v170 = vld [vmem:[#allocation8 + $0x10] sm:$0xff]
    %v171 = vld [vmem:[#allocation8 + $0x18] sm:$0xff]
    %v172 = vld [vmem:[#allocation8 + $0x20] sm:$0xff]
    %v173 = vld [vmem:[#allocation8 + $0x28] sm:$0xff]
    %v174 = vld [vmem:[#allocation8 + $0x30] sm:$0xff]
    %v175 = vld [vmem:[#allocation8 + $0x38] sm:$0xff]
    %v176 = vld [vmem:[#allocation8 + $0x40] sm:$0xff]
    %v177 = vld [vmem:[#allocation8 + $0x48] sm:$0xff]
    %v178 = vld [vmem:[#allocation8 + $0x50] sm:$0xff]
    %v179 = vld [vmem:[#allocation8 + $0x58] sm:$0xff]
    %v180 = vld [vmem:[#allocation8 + $0x60] sm:$0xff]
    %v181 = vld [vmem:[#allocation8 + $0x68] sm:$0xff]
    %v182 = vld [vmem:[#allocation8 + $0x70] sm:$0xff]
    %v183 = vld [vmem:[#allocation8 + $0x78] sm:$0xff]
    %184 = vmatprep.subr.mxu0 0.0
    %185 = vmatpush1.msra.mxu0 %v168
    %186 = vmatprep.subr.mxu0 0.0
    %187 = vmatpush1.msra.mxu0 %v169
    %188 = vmatprep.subr.mxu0 0.0
    %189 = vmatpush1.msra.mxu0 %v170
    %190 = vmatprep.subr.mxu0 0.0
    %191 = vmatpush1.msra.mxu0 %v171
    %192 = vmatprep.subr.mxu0 0.0
    %193 = vmatpush1.msra.mxu0 %v172
    %194 = vmatprep.subr.mxu0 0.0
    %195 = vmatpush1.msra.mxu0 %v173
    %196 = vmatprep.subr.mxu0 0.0
    %197 = vmatpush1.msra.mxu0 %v174
    %198 = vmatprep.subr.mxu0 0.0
    %199 = vmatpush1.msra.mxu0 %v175
    %200 = vmatprep.subr.mxu0 0.0
    %201 = vmatpush1.msra.mxu0 %v176
    %202 = vmatprep.subr.mxu0 0.0
    %203 = vmatpush1.msra.mxu0 %v177
    %204 = vmatprep.subr.mxu0 0.0
    %205 = vmatpush1.msra.mxu0 %v178
    %206 = vmatprep.subr.mxu0 0.0
    %207 = vmatpush1.msra.mxu0 %v179
    %208 = vmatprep.subr.mxu0 0.0
    %209 = vmatpush1.msra.mxu0 %v180
    %210 = vmatprep.subr.mxu0 0.0
    %211 = vmatpush1.msra.mxu0 %v181
    %212 = vmatprep.subr.mxu0 0.0
    %213 = vmatpush1.msra.mxu0 %v182
    %214 = vmatprep.subr.mxu0 0.0
    %215 = vmatpush1.msra.mxu0 %v183
    %216 = vmatprep.subr.mxu0 0.0
    %217 = vmatpush1.msra.mxu0 0.0
    %218 = vmatprep.subr.mxu0 0.0
    %219 = vmatpush1.msra.mxu0 0.0
    %220 = vmatprep.subr.mxu0 0.0
    %221 = vmatpush1.msra.mxu0 0.0
    %222 = vmatprep.subr.mxu0 0.0
    %223 = vmatpush1.msra.mxu0 0.0
    %224 = vmatprep.subr.mxu0 0.0
    %225 = vmatpush1.msra.mxu0 0.0
    %226 = vmatprep.subr.mxu0 0.0
    %227 = vmatpush1.msra.mxu0 0.0
    %228 = vmatprep.subr.mxu0 0.0
    %229 = vmatpush1.msra.mxu0 0.0
    %230 = vmatprep.subr.mxu0 0.0
    %231 = vmatpush1.msra.mxu0 0.0
    %232 = vmatprep.subr.mxu0 0.0
    %233 = vmatpush1.msra.mxu0 0.0
    %234 = vmatprep.subr.mxu0 0.0
    %235 = vmatpush1.msra.mxu0 0.0
    %236 = vmatprep.subr.mxu0 0.0
    %237 = vmatpush1.msra.mxu0 0.0
    %238 = vmatprep.subr.mxu0 0.0
    %239 = vmatpush1.msra.mxu0 0.0
    %240 = vmatprep.subr.mxu0 0.0
    %241 = vmatpush1.msra.mxu0 0.0
    %242 = vmatprep.subr.mxu0 0.0
    %243 = vmatpush1.msra.mxu0 0.0
    %244 = vmatprep.subr.mxu0 0.0
    %245 = vmatpush1.msra.mxu0 0.0
    %246 = vmatprep.subr.mxu0 0.0
    %247 = vmatpush1.msra.mxu0 0.0
    %248 = vmatprep.mubr.f32.mxu0 0.0
    %249 = vmatmul.mubr.f32.gmra.mrb[0].mxu0 %v164
    %v250 = vpop.f32.mrb[0].mxu0
    %v251 = vadd.f32 0.0, %v250
    %v252 = vpop.f32.mrb[0].mxu0
    %253 = vmatprep.mubr.f32.mxu0 0.0
    %254 = vmatmul.mubr.f32.gmra.mrb[0].mxu0 %v165
    %v255 = vpop.f32.mrb[0].mxu0
    %v256 = vadd.f32 0.0, %v255
    %v257 = vpop.f32.mrb[0].mxu0
    %258 = vdwg.mxu0
    %v259 = vadd.f32 %v166, %v251
    %v260 = vadd.f32 %v167, %v256
    %261 = vst [vmem:[#allocation2] sm:$0xff] %v259
    %262 = vst [vmem:[#allocation2 + $0x8] sm:$0xff] %v260
    %v263 = vld [vmem:[%s4] sm:$0x1]
    %v264 = vld [vmem:[%s4 + $0x1] sm:$0x1]
    %v265 = vld [vmem:[%s4 + $0x2] sm:$0x1]
    %v266 = vld [vmem:[#allocation2] sm:$0xff]
    %v267 = vld [vmem:[#allocation2 + $0x8] sm:$0xff]
    %v268 = vlaneseq
    %v269 = vshrl.u32 %v268, 7
    %v270 = vsub.s32 0, %v269
    %v271 = vrot.slane %v263, %v270
    %v272 = vadd.f32 %v266, %v271
    %v273 = vadd.f32 %v267, %v271
    %v274 = vadd.f32 %v272, %v62
    %v275 = vadd.f32 %v273, %v63
    %276 = vadd.xlane.f32.xlu0 %v274
    %v277 = vpop.xlane.xlu0 %276
    %278 = vadd.xlane.f32.xlu0 %v275
    %v279 = vpop.xlane.xlu0 %278
    %v280 = vmul.f32 %v274, %v274
    %v281 = vmul.f32 %v275, %v275
    %282 = vadd.xlane.f32.xlu0 %v280
    %v283 = vpop.xlane.xlu0 %282
    %284 = vadd.xlane.f32.xlu0 %v281
    %v285 = vpop.xlane.xlu0 %284
    %v286 = vmul.f32 %v277, 0.03125
    %v287 = vmul.f32 %v279, 0.03125
    %v288 = vmul.f32 %v283, 0.03125
    %v289 = vmul.f32 %v285, 0.03125
    %v290 = vmul.f32 %v286, %v286
    %v291 = vmul.f32 %v287, %v287
    %v292 = vsub.f32 %v288, %v290
    %v293 = vsub.f32 %v289, %v291
    %v294 = vsub.f32 %v274, %v286
    %v295 = vsub.f32 %v275, %v287
    %v296 = vadd.f32 %v292, 1e-06
    %v297 = vadd.f32 %v293, 1e-06
    %v298 = vrsqrt.pop %v296
    %v299 = vrsqrt.pop %v297
    %v300 = vmul.f32 %v294, %v298
    %v301 = vmul.f32 %v295, %v299
    %v302 = vlaneseq
    %v303 = vshrl.u32 %v302, 7
    %v304 = vsub.s32 0, %v303
    %v305 = vrot.slane %v264, %v304
    %v306 = vmul.f32 %v300, %v305
    %v307 = vmul.f32 %v301, %v305
    %v308 = vlaneseq
    %v309 = vshrl.u32 %v308, 7
    %v310 = vsub.s32 0, %v309
    %v311 = vrot.slane %v265, %v310
    %v312 = vadd.f32 %v306, %v311
    %v313 = vadd.f32 %v307, %v311
    %314 = vst [vmem:[#allocation9] sm:$0xff] %v312
    %315 = vst [vmem:[#allocation9 + $0x8] sm:$0xff] %v313
    // Predicated region
    $region34: #{tpu_custom_call.1} parent=1 // pred_check
      _
    $region35: #{tpu_custom_call.1} parent=1 // pred_check_branch
      %317 = sbr.rel (0) target = $region37
    $region36: #{tpu_custom_call.1} parent=1 // pred_region
      %s319 = ssub.s32 256, 256
      %320 = vsyncadd [#allocation5], %s319
      %s321 = sshll.u32 [#allocation9], 4
      %s322 = int_to_ptr.vmem [resolvable:$true] %s321
      %327 = dma.vmem_to_hbm [thread:$0]  %s322, 256, %s5, [#allocation5], 128, 128, 8
    $region37: #{tpu_custom_call.1} parent=1 // pred_fallthru
      _
    // Predicated region
    $region38: #{tpu_custom_call.1} parent=1 // pred_check
      _
    $region39: #{tpu_custom_call.1} parent=1 // pred_check_branch
      %329 = sbr.rel (0) target = $region41
    $region40: #{tpu_custom_call.1} parent=1 // pred_region
      %330 = dma.done [#allocation5], 256
    $region41: #{tpu_custom_call.1} parent=1 // pred_fallthru
      _
    %331 = vsyncpa [#allocation4], 1
    %332 = vsyncpa [#allocation7], 1
    %333 = vsyncpa [#allocation5], 1

</llo_original>
